<compile_context>
chip_gen: v7x
topology: tpu7x:2x2x1
jax: 0.10.0
libtpu: 0.0.40
codegen_flags: <defaults>
</compile_context>

<pallas_src>
import functools
import math

import jax
import jax.numpy as jnp
from jax.experimental import pallas as pl
from jax.experimental.pallas import tpu as pltpu

BN_EPS = 1e-5
BN_SCALE = 1.0 / math.sqrt(1.0 + BN_EPS)

TN = 128          # output-channel tile (lane dim)
TM_MAX = 256      # output-row tile
CK = 256          # in-kernel Cin chunk (K of each MXU dot)
EW_LANES = 512    # elementwise kernel lane width


def _round_up(v, m):
    return (v + m - 1) // m * m


# ---------------------------------------------------------------------------
# Pallas conv kernel (im2col-free, stride-1)
# ---------------------------------------------------------------------------
def _conv_kernel(x_ref, w_ref, o_ref, *, offs, cin, tm, relu):
    """x_ref: [rows, Cin] bf16 flattened padded image (full image in VMEM),
    w_ref: [kh*kw*Cin, TN] bf16 (BN scale folded), o_ref: [tm, TN] f32.
    Patch windows are row-shifted slices taken from VMEM, so the kh*kw
    expansion never touches HBM."""
    i = pl.program_id(1)
    base = i * tm
    acc = jnp.zeros((tm, o_ref.shape[-1]), jnp.float32)
    for p, off in enumerate(offs):
        for c0 in range(0, cin, CK):
            cs = min(CK, cin - c0)
            a = x_ref[pl.ds(base + off, tm), pl.ds(c0, cs)]
            w = w_ref[pl.ds(p * cin + c0, cs), :]
            acc = acc + jnp.dot(a, w, preferred_element_type=jnp.float32)
    if relu:
        acc = jnp.maximum(acc, 0.0)
    o_ref[...] = acc


@functools.lru_cache(maxsize=None)
def _build_conv(B, mfull, cin, P, npad, m_pad, tm, offs, relu, per_batch):
    grid = (B, m_pad // tm, npad // TN)
    kern = functools.partial(_conv_kernel, offs=offs, cin=cin, tm=tm, relu=relu)
    if per_batch:
        w_map = lambda b, i, j: (b, 0, j)
    else:
        w_map = lambda b, i, j: (0, 0, j)
    flops = 2 * B * m_pad * P * cin * npad
    bytes_acc = ((B * mfull * cin + (B if per_batch else 1) * P * cin * npad) * 2
                 + B * m_pad * npad * 4)
    fn = pl.pallas_call(
        kern,
        out_shape=jax.ShapeDtypeStruct((B, m_pad, npad), jnp.float32),
        grid_spec=pltpu.PrefetchScalarGridSpec(
            num_scalar_prefetch=0,
            grid=grid,
            in_specs=[
                pl.BlockSpec((None, mfull, cin), lambda b, i, j: (b, 0, 0)),
                pl.BlockSpec((None, P * cin, TN), w_map),
            ],
            out_specs=pl.BlockSpec((None, tm, TN), lambda b, i, j: (b, i, j)),
        ),
        compiler_params=pltpu.CompilerParams(
            dimension_semantics=("parallel", "parallel", "parallel")),
        cost_estimate=pl.CostEstimate(flops=flops, transcendentals=0,
                                      bytes_accessed=bytes_acc),
    )
    return jax.jit(fn)


def prep_weight(w, scale=1.0):
    """[kh,kw,Cin,Cout] f32 -> [1, kh*kw*Cin, Npad] bf16 with scale folded."""
    kh, kw, cin, cout = w.shape
    npad = _round_up(cout, TN)
    wm = (w * scale).reshape(kh * kw * cin, cout)
    wm = jnp.pad(wm, ((0, 0), (0, npad - cout)))
    return wm.astype(jnp.bfloat16)[None]


def conv2d_s1(x, w_prep, *, kh, kw, cout, padding, dilation, relu):
    """Stride-1 conv, NHWC.  w_prep: [Bw, kh*kw*Cin, Npad] bf16 (scale folded);
    Bw == B selects per-sample weights (adaptive rotated conv)."""
    B, H, W, cin = x.shape
    npad = w_prep.shape[-1]
    Hp, Wp = H + 2 * padding, W + 2 * padding
    Ho = Hp - dilation * (kh - 1)
    Wo = Wp - dilation * (kw - 1)
    m_out = Ho * Wp                      # evaluated on padded width, cropped after
    tm = TM_MAX if m_out > TM_MAX else _round_up(m_out, 8)
    m_pad = _round_up(m_out, tm)
    off_max = dilation * (kh - 1) * Wp + dilation * (kw - 1)
    mfull = _round_up(m_pad + off_max, 8)
    offs = tuple(iy * dilation * Wp + ix * dilation
                 for iy in range(kh) for ix in range(kw))
    xb = x.astype(jnp.bfloat16)
    if padding:
        xb = jnp.pad(xb, ((0, 0), (padding, padding), (padding, padding), (0, 0)))
    xb = xb.reshape(B, Hp * Wp, cin)
    xb = jnp.pad(xb, ((0, 0), (0, mfull - Hp * Wp), (0, 0)))
    fn = _build_conv(B, mfull, cin, kh * kw, npad, m_pad, tm, offs, bool(relu),
                     w_prep.shape[0] > 1)
    out = fn(xb, w_prep)                                     # [B, m_pad, npad]
    out = out[:, :m_out, :cout].reshape(B, Ho, Wp, cout)[:, :, :Wo, :]
    return out


# ---------------------------------------------------------------------------
# Pallas matmul kernel (single K block; rotation matmul + strided-conv fallback)
# ---------------------------------------------------------------------------
def _mm_kernel(a_ref, b_ref, o_ref, *, relu):
    y = jnp.dot(a_ref[...], b_ref[...], preferred_element_type=jnp.float32)
    if relu:
        y = jnp.maximum(y, 0.0)
    o_ref[...] = y


@functools.lru_cache(maxsize=None)
def _build_mm(Mp, K, Np, tm, tn, relu):
    grid = (Mp // tm, Np // tn)
    fn = pl.pallas_call(
        functools.partial(_mm_kernel, relu=relu),
        out_shape=jax.ShapeDtypeStruct((Mp, Np), jnp.float32),
        grid_spec=pltpu.PrefetchScalarGridSpec(
            num_scalar_prefetch=0,
            grid=grid,
            in_specs=[pl.BlockSpec((tm, K), lambda i, j: (i, 0)),
                      pl.BlockSpec((K, tn), lambda i, j: (0, j))],
            out_specs=pl.BlockSpec((tm, tn), lambda i, j: (i, j)),
        ),
        compiler_params=pltpu.CompilerParams(
            dimension_semantics=("parallel", "parallel")),
        cost_estimate=pl.CostEstimate(
            flops=2 * Mp * K * Np, transcendentals=0,
            bytes_accessed=(Mp * K + K * Np + Mp * Np) * 4),
    )
    return jax.jit(fn)


def matmul_fused(A, Wm, relu=False):
    """relu_opt(A @ Wm) -> f32.  K always fits a single block at our call sites."""
    M, K = A.shape
    _, N = Wm.shape
    Np = _round_up(N, TN)
    tm = TM_MAX if M > TM_MAX else _round_up(M, 8)
    Mp = _round_up(M, tm)
    if Np <= 256:
        tn = Np
    elif Np % 512 == 0:
        tn = 512
    elif Np % 256 == 0:
        tn = 256
    else:
        tn = 128
    Ap = jnp.pad(A, ((0, Mp - M), (0, 0)))
    Wp_ = jnp.pad(Wm, ((0, 0), (0, Np - N)))
    out = _build_mm(Mp, K, Np, tm, tn, bool(relu))(Ap, Wp_)
    return out[:M, :N]


def conv2d_im2col(x, wm, *, k, cout, stride, padding, dilation, relu):
    """Host im2col fallback -- only the two strided 3x3 convs use this."""
    B, H, W, cin = x.shape
    xb = x.astype(jnp.bfloat16)
    xp = jnp.pad(xb, ((0, 0), (padding, padding), (padding, padding), (0, 0)))
    Hp, Wp = H + 2 * padding, W + 2 * padding
    Ho = (Hp - dilation * (k - 1) - 1) // stride + 1
    Wo = (Wp - dilation * (k - 1) - 1) // stride + 1
    cols = []
    for iy in range(k):
        for ix in range(k):
            y0, x0 = iy * dilation, ix * dilation
            cols.append(xp[:, y0:y0 + stride * (Ho - 1) + 1:stride,
                           x0:x0 + stride * (Wo - 1) + 1:stride, :])
    A = jnp.concatenate(cols, axis=-1).reshape(B * Ho * Wo, k * k * cin)
    out = matmul_fused(A, wm, relu)
    return out[:, :cout].reshape(B, Ho, Wo, cout)


# ---------------------------------------------------------------------------
# Pallas elementwise kernels (lane-dense, tiled)
# ---------------------------------------------------------------------------
def _ew_kernel(a_ref, b_ref, o_ref, *, op):
    a = a_ref[...]
    b = b_ref[...]
    if op == "mul":
        o_ref[...] = a * b
    else:  # "add_relu"
        o_ref[...] = jnp.maximum(a + b, 0.0)


@functools.lru_cache(maxsize=None)
def _build_ew(rows, br, op):
    grid = (rows // br,)
    fn = pl.pallas_call(
        functools.partial(_ew_kernel, op=op),
        out_shape=jax.ShapeDtypeStruct((rows, EW_LANES), jnp.float32),
        grid_spec=pltpu.PrefetchScalarGridSpec(
            num_scalar_prefetch=0,
            grid=grid,
            in_specs=[pl.BlockSpec((br, EW_LANES), lambda i: (i, 0)),
                      pl.BlockSpec((br, EW_LANES), lambda i: (i, 0))],
            out_specs=pl.BlockSpec((br, EW_LANES), lambda i: (i, 0)),
        ),
        compiler_params=pltpu.CompilerParams(dimension_semantics=("parallel",)),
    )
    return jax.jit(fn)


def _ew(a, b, op):
    shape = a.shape
    fa, fb = a.reshape(-1), b.reshape(-1)
    L = fa.shape[0]
    rows = -(-L // EW_LANES)
    rows_pad = _round_up(rows, 8)
    br = rows_pad
    if rows_pad > 256:
        br = 256
        rows_pad = _round_up(rows, br)
    Lp = rows_pad * EW_LANES
    ap = jnp.pad(fa, (0, Lp - L)).reshape(rows_pad, EW_LANES)
    bp = jnp.pad(fb, (0, Lp - L)).reshape(rows_pad, EW_LANES)
    out = _build_ew(rows_pad, br, op)(ap, bp)
    return out.reshape(-1)[:L].reshape(shape)


def pallas_mul(a, b):
    return _ew(a, b, "mul")


def pallas_add_relu(a, b):
    return _ew(a, b, "add_relu")


# ---------------------------------------------------------------------------
# Spatial glue (plain JAX)
# ---------------------------------------------------------------------------
def bilinear_resize(x, out_h, out_w):
    """align_corners=True bilinear, NHWC."""
    B, H, W, C = x.shape

    def coords(out_s, in_s):
        if out_s == 1:
            return jnp.zeros((1,), jnp.float32)
        return jnp.arange(out_s, dtype=jnp.float32) * ((in_s - 1) / (out_s - 1))

    ys, xs = coords(out_h, H), coords(out_w, W)
    y0 = jnp.floor(ys).astype(jnp.int32)
    y1 = jnp.minimum(y0 + 1, H - 1)
    wy = ys - y0.astype(jnp.float32)
    x0 = jnp.floor(xs).astype(jnp.int32)
    x1 = jnp.minimum(x0 + 1, W - 1)
    wx = xs - x0.astype(jnp.float32)
    top = x[:, y0, :, :]
    bot = x[:, y1, :, :]
    rows = top * (1.0 - wy)[None, :, None, None] + bot * wy[None, :, None, None]
    left = rows[:, :, x0, :]
    right = rows[:, :, x1, :]
    return left * (1.0 - wx)[None, None, :, None] + right * wx[None, None, :, None]


def nearest_resize(x, out_h, out_w):
    B, H, W, C = x.shape
    iy = (jnp.arange(out_h) * H) // out_h
    ix = (jnp.arange(out_w) * W) // out_w
    return x[:, iy][:, :, ix]


def adaptive_avg_pool(x, out_size):
    B, H, W, C = x.shape
    rows = []
    for i in range(out_size):
        hs, he = (i * H) // out_size, -(-((i + 1) * H) // out_size)
        cols = []
        for j in range(out_size):
            ws, we = (j * W) // out_size, -(-((j + 1) * W) // out_size)
            cols.append(jnp.mean(x[:, hs:he, ws:we, :], axis=(1, 2)))
        rows.append(jnp.stack(cols, axis=1))
    return jnp.stack(rows, axis=1)


# ---------------------------------------------------------------------------
# Rotated-weight machinery (faithful port, k == 3 path)
# ---------------------------------------------------------------------------
def _get_rotation_matrix(thetas):
    bs, g = thetas.shape
    t = thetas.reshape(-1)
    x = jnp.cos(t)
    y = jnp.sin(t)
    a = x - y
    b = x * y
    c = x + y
    z = jnp.zeros_like(x)
    o = jnp.ones_like(x)

    def row(*e):
        return jnp.stack(e, axis=0)

    pos = jnp.stack([
        row(a, 1 - a, z, z, z, z, z, z, z),
        row(z, x - b, b, z, 1 - c + b, y - b, z, z, z),
        row(z, z, a, z, z, 1 - a, z, z, z),
        row(b, y - b, z, x - b, 1 - c + b, z, z, z, z),
        row(z, z, z, z, o, z, z, z, z),
        row(z, z, z, z, 1 - c + b, x - b, z, y - b, b),
        row(z, z, z, 1 - a, z, z, a, z, z),
        row(z, z, z, y - b, 1 - c + b, z, b, x - b, z),
        row(z, z, z, z, z, z, z, 1 - a, a),
    ], axis=0)
    neg = jnp.stack([
        row(c, z, z, 1 - c, z, z, z, z, z),
        row(-b, x + b, z, b - y, 1 - a - b, z, z, z, z),
        row(z, 1 - c, c, z, z, z, z, z, z),
        row(z, z, z, x + b, 1 - a - b, z, -b, b - y, z),
        row(z, z, z, z, o, z, z, z, z),
        row(z, b - y, -b, z, 1 - a - b, x + b, z, z, z),
        row(z, z, z, z, z, z, c, 1 - c, z),
        row(z, z, z, z, 1 - a - b, b - y, z, x + b, -b),
        row(z, z, z, z, z, 1 - c, z, z, c),
    ], axis=0)
    mask = (t >= 0).astype(jnp.float32)[None, None, :]
    rot = mask * pos + (1.0 - mask) * neg              # [9, 9, bs*g]
    rot = jnp.transpose(rot, (2, 0, 1)).reshape(bs, g, 9, 9)
    return rot


def batch_rotate_multiweight(weights, lambdas, thetas):
    """weights [n,Cout,Cin,3,3], lambdas/thetas [b,n] -> [b,Cout,Cin,3,3]."""
    b, n = thetas.shape
    k = weights.shape[-1]
    _, Cout, Cin = weights.shape[:3]
    rot = _get_rotation_matrix(thetas) * lambdas[:, :, None, None]
    rot = jnp.transpose(rot, (0, 2, 1, 3)).reshape(b * k * k, n * k * k)
    wflat = jnp.transpose(weights, (0, 3, 4, 1, 2)).reshape(n * k * k, Cout * Cin)
    w = matmul_fused(rot, wflat)                       # Pallas MXU matmul (f32)
    w = w.reshape(b, k, k, Cout, Cin)
    return jnp.transpose(w, (0, 3, 4, 1, 2))


# ---------------------------------------------------------------------------
# Deterministic parameter generation (kaiming_normal fan_in / relu)
# ---------------------------------------------------------------------------
class ParamGen:
    def __init__(self, seed=0):
        self._key = jax.random.PRNGKey(seed)

    def _next(self):
        self._key, k = jax.random.split(self._key)
        return k

    def conv(self, kh, kw, cin, cout):
        std = math.sqrt(2.0 / (kh * kw * cin))
        return std * jax.random.normal(self._next(), (kh, kw, cin, cout),
                                       jnp.float32)

    def linear(self, cin, cout):
        std = math.sqrt(2.0 / cin)
        return std * jax.random.normal(self._next(), (cin, cout), jnp.float32)

    def arc(self, n, cout, cin, k):
        std = math.sqrt(2.0 / (cin * k * k))
        return std * jax.random.normal(self._next(), (n, cout, cin, k, k),
                                       jnp.float32)


# ---------------------------------------------------------------------------
# Module builders (functional closures mirroring the PyTorch modules)
# ---------------------------------------------------------------------------
def make_conv(pg, cin, cout, k=3, s=1, p=1, d=1, bn=True, relu=True):
    """basicConv equivalent: Conv(+BN)(+ReLU) with the constant BN scale folded
    into the weights (zero bias).  TODO(synk): re-derive per-channel scale/bias
    folding if real checkpoint BN stats are ever loaded."""
    w = pg.conv(k, k, cin, cout)
    scale = BN_SCALE if bn else 1.0
    if s == 1:
        wp = prep_weight(w, scale)

        def f(x):
            return conv2d_s1(x, wp, kh=k, kw=k, cout=cout, padding=p,
                             dilation=d, relu=relu)
        return f
    if k == 1 and p == 0 and d == 1:
        wp = prep_weight(w, scale)

        def f(x):
            return conv2d_s1(x[:, ::s, ::s, :], wp, kh=1, kw=1, cout=cout,
                             padding=0, dilation=1, relu=relu)
        return f
    wm = (w * scale).reshape(k * k * cin, cout).astype(jnp.bfloat16)

    def f(x):
        return conv2d_im2col(x, wm, k=k, cout=cout, stride=s, padding=p,
                             dilation=d, relu=relu)
    return f


def Conv3x3Head(pg, cin, cout):
    # TODO(synk): conv bias is zero-initialized by weight_init, so it is dropped.
    return make_conv(pg, cin, cout, k=3, s=1, p=1, bn=False, relu=False)


def FFM(pg, ch):
    c1 = make_conv(pg, ch, ch, k=3, s=1, p=1, bn=True, relu=True)
    c2 = make_conv(pg, ch, ch, k=3, s=1, p=1, bn=True, relu=True)

    def f(x1, x2):
        out = pallas_mul(x1, x2)
        return c2(c1(out))
    return f


def CAM(pg, ch):
    down = make_conv(pg, ch, ch, k=3, s=2, p=1, bn=True, relu=True)
    c1 = make_conv(pg, ch, ch, k=3, s=1, p=1, bn=True, relu=True)
    c2 = make_conv(pg, ch, ch, k=3, s=1, p=1, bn=True, relu=True)
    mul = FFM(pg, ch)

    def f(x_high, x_low):
        left_1 = x_low
        left_2 = down(x_low)
        right_1 = bilinear_resize(x_high, x_low.shape[1], x_low.shape[2])
        right_2 = x_high
        left = c1(pallas_mul(left_1, right_1))
        right = c2(pallas_mul(left_2, right_2))
        right = bilinear_resize(right, x_low.shape[1], x_low.shape[2])
        return mul(left, right)
    return f


def PyramidPooling(pg, cin, cout):
    hid = cin // 4
    c1 = make_conv(pg, cin, hid, k=1, s=1, p=0)
    c2 = make_conv(pg, cin, hid, k=1, s=1, p=0)
    c3 = make_conv(pg, cin, hid, k=1, s=1, p=0)
    c4 = make_conv(pg, cin, hid, k=1, s=1, p=0)
    out = make_conv(pg, cin * 2, cout, k=1, s=1, p=0)

    def f(x):
        H, W = x.shape[1], x.shape[2]
        f1 = nearest_resize(c1(adaptive_avg_pool(x, 1)), H, W)
        f2 = nearest_resize(c2(adaptive_avg_pool(x, 2)), H, W)
        f3 = nearest_resize(c3(adaptive_avg_pool(x, 3)), H, W)
        f4 = nearest_resize(c4(adaptive_avg_pool(x, 6)), H, W)
        xcat = jnp.concatenate([x, f1, f2, f3, f4], axis=-1)
        return out(xcat)
    return f


def RFB_modified(pg, cin, cout):
    # NOTE: basicConv(in, out, 1, ...) keeps the default padding of 1 with a
    # 1x1 kernel, so spatial size grows by 2 -- reproduced faithfully.
    b0 = [make_conv(pg, cin, cout, k=1, relu=False)]
    b1 = [make_conv(pg, cin, cout, k=1),
          make_conv(pg, cout, cout, k=7, p=3),
          make_conv(pg, cout, cout, k=3, p=7, d=7, relu=False)]
    b2 = [make_conv(pg, cin, cout, k=1),
          make_conv(pg, cout, cout, k=7, p=3),
          make_conv(pg, cout, cout, k=7, p=3),
          make_conv(pg, cout, cout, k=3, p=7, d=7, relu=False)]
    conv_cat = make_conv(pg, 3 * cout, cout, k=3, p=1, relu=False)
    conv_res = make_conv(pg, cin, cout, k=1, relu=False)

    def seq(layers, x):
        for layer in layers:
            x = layer(x)
        return x

    def f(x):
        x0 = seq(b0, x)
        x1 = seq(b1, x)
        x2 = seq(b2, x)
        x_cat = conv_cat(jnp.concatenate([x0, x1, x2], axis=-1))
        return pallas_add_relu(x_cat, conv_res(x))
    return f


def RountingFunction(pg, in_channels, kernel_number):
    # TODO(synk): original RountingFunction not provided; simplified GAP+Linear.
    w_alpha = pg.linear(in_channels, kernel_number)
    w_theta = pg.linear(in_channels, kernel_number)

    def f(x):
        g = jnp.mean(x, axis=(1, 2))                    # [B, Cin]
        lambdas = jax.nn.sigmoid(g @ w_alpha)           # [B, n]
        thetas = jax.nn.soft_sign(g @ w_theta)          # [B, n] (radians)
        return lambdas, thetas
    return f


def IntensityPositionModule(pg, inplanes, outplanes):
    routing = RountingFunction(pg, inplanes, 4)
    arc_w = pg.arc(4, inplanes, inplanes, 3)            # [n, Cout, Cin, 3, 3]
    post = make_conv(pg, inplanes, outplanes, k=1, s=1, p=0, bn=True, relu=True)
    npad = _round_up(inplanes, TN)

    def f(x):
        lambdas, thetas = routing(x)
        wb = batch_rotate_multiweight(arc_w, lambdas, thetas)  # [B,Cout,Cin,3,3]
        B = wb.shape[0]
        # [B,Cout,Cin,3,3] -> [B, 9*Cin, Cout], fold BN scale, pad, bf16.
        wk = jnp.transpose(wb, (0, 3, 4, 2, 1)).reshape(B, 9 * inplanes, inplanes)
        wk = jnp.pad(wk * BN_SCALE, ((0, 0), (0, 0), (0, npad - inplanes)))
        wk = wk.astype(jnp.bfloat16)
        # One batched pallas_call with per-sample weights (grouped conv, g=B).
        y = conv2d_s1(x, wk, kh=3, kw=3, cout=inplanes, padding=1, dilation=1,
                      relu=True)
        return post(y)
    return f


def BackboneStub(pg):
    # TODO(synk): ResNeXt101 not available; deterministic conv pyramid stand-in
    # producing the same channel counts / strides (64,256,512,1024,2048 @ /2../32).
    s1 = make_conv(pg, 3, 64, k=3, s=2, p=1)
    s2 = make_conv(pg, 64, 256, k=1, s=2, p=0)
    s3 = make_conv(pg, 256, 512, k=1, s=2, p=0)
    s4 = make_conv(pg, 512, 1024, k=1, s=2, p=0)
    s5 = make_conv(pg, 1024, 2048, k=1, s=2, p=0)

    def f(x):
        a = s1(x)
        b = s2(a)
        c = s3(b)
        d = s4(c)
        e = s5(d)
        return a, b, c, d, e
    return f


def build_net(pg, mode="train"):
    bkbone = BackboneStub(pg)
    pyramid = PyramidPooling(pg, 2048, 64)
    conv1_0 = make_conv(pg, 64, 64, k=1, s=1, p=0)
    conv1_1 = make_conv(pg, 256, 64, k=1, s=1, p=0)
    conv1_2 = make_conv(pg, 512, 64, k=1, s=1, p=0)
    heads = [Conv3x3Head(pg, 64, 1) for _ in range(6)]
    ffms = [FFM(pg, 64) for _ in range(5)]
    ipms = [IntensityPositionModule(pg, 64, 64) for _ in range(5)]
    cam = CAM(pg, 64)
    ca1 = RFB_modified(pg, 1024, 64)
    ca2 = RFB_modified(pg, 2048, 64)
    refine = make_conv(pg, 64, 64, k=1, s=1, p=0)

    def forward(x):                                     # x NHWC
        shape = (x.shape[1], x.shape[2])
        bk1, bk2, bk3, bk4, bk5 = bkbone(x)

        fused4 = pyramid(bk5)
        f5 = ca2(bk5)
        f5 = ipms[3](f5)
        fused4 = bilinear_resize(fused4, f5.shape[1], f5.shape[2])
        fused3 = ffms[4](f5, fused4)

        f4 = ca1(bk4)
        f4 = ipms[4](f4)
        fused3 = bilinear_resize(fused3, f4.shape[1], f4.shape[2])
        fused2 = ffms[3](f4, fused3)

        f3 = conv1_2(bk3)
        f3 = ipms[2](f3)
        f2 = conv1_1(bk2)
        f2 = ipms[1](f2)
        f3 = bilinear_resize(f3, f2.shape[1], f2.shape[2])
        fused1 = ffms[2](f2, f3)

        fused2 = bilinear_resize(fused2, fused1.shape[1] // 2,
                                 fused1.shape[2] // 2)
        fused1 = cam(fused2, fused1)

        f1 = conv1_0(bk1)
        f1 = ipms[0](f1)
        f2 = bilinear_resize(f2, f1.shape[1], f1.shape[2])
        fused0 = ffms[1](f2, f1)
        fused1 = bilinear_resize(fused1, fused0.shape[1], fused0.shape[2])
        out0 = ffms[0](fused1, fused0)
        out0 = refine(out0)

        edge0 = bilinear_resize(heads[0](fused0), shape[0], shape[1])
        out0 = bilinear_resize(heads[1](out0), shape[0], shape[1])
        if mode == "train":
            out1 = bilinear_resize(heads[2](fused1), shape[0], shape[1])
            out2 = bilinear_resize(heads[3](fused2), shape[0], shape[1])
            out3 = bilinear_resize(heads[4](fused3), shape[0], shape[1])
            out4 = bilinear_resize(heads[5](fused4), shape[0], shape[1])
            return out0, edge0, out1, out2, out3, out4
        return out0, edge0
    return forward


# ---------------------------------------------------------------------------
if __name__ == "__main__":
    pg = ParamGen(seed=0)
    net = build_net(pg, mode="train")

    key = jax.random.PRNGKey(0)
    x_nchw = jax.random.normal(key, (2, 3, 64, 64), jnp.float32)   # NCHW in
    x = jnp.transpose(x_nchw, (0, 2, 3, 1))                        # -> NHWC

    outs = net(x)
    outs = [jnp.transpose(o, (0, 3, 1, 2)) for o in outs]          # -> NCHW
    for o in outs:
        jax.block_until_ready(o)
    assert all(o.shape == (2, 1, 64, 64) for o in outs)
    print("KERNEL_OK")
</pallas_src>

<mosaic_0001>
module attributes {stable_mosaic.version = 11 : i64} {
  func.func @_mm_kernel(%arg0: i32, %arg1: i32, %arg2: memref<256x27xbf16, #tpu.memory_space<vmem>>, %arg3: memref<27x128xbf16, #tpu.memory_space<vmem>>, %arg4: memref<256x128xf32, #tpu.memory_space<vmem>>) attributes {dimension_semantics = [#tpu.dimension_semantics<parallel>, #tpu.dimension_semantics<parallel>], iteration_bounds = array<i64: 8, 1>, scalar_prefetch = 0 : i64, scratch_operands = 0 : i64, tpu.core_type = #tpu.core_type<tc>, window_params = [{transform_indices = @transform_0, window_bounds = array<i64: 256, 27>}, {transform_indices = @transform_1, window_bounds = array<i64: 27, 128>}, {transform_indices = @transform_2, window_bounds = array<i64: 256, 128>}]} {
    %c0 = arith.constant 0 : index
    %c0_0 = arith.constant 0 : index
    %0 = vector.load %arg2[%c0, %c0_0] : memref<256x27xbf16, #tpu.memory_space<vmem>>, vector<256x27xbf16>
    %c0_1 = arith.constant 0 : index
    %c0_2 = arith.constant 0 : index
    %1 = vector.load %arg3[%c0_1, %c0_2] : memref<27x128xbf16, #tpu.memory_space<vmem>>, vector<27x128xbf16>
    %cst = arith.constant dense<0.000000e+00> : vector<256x128xf32>
    %2 = tpu.matmul %0, %1, %cst {dimension_numbers = #tpu.dot_dimension_numbers<[1], [0], [0], [1], [0, 0, 1, 1], [], []>} : vector<256x27xbf16>, vector<27x128xbf16>, vector<256x128xf32> -> vector<256x128xf32>
    %cst_3 = arith.constant 0.000000e+00 : f32
    %3 = vector.broadcast %cst_3 : f32 to vector<256x128xf32>
    %4 = arith.maximumf %2, %3 : vector<256x128xf32>
    %c0_4 = arith.constant 0 : index
    %c0_5 = arith.constant 0 : index
    %5 = vector.load %arg4[%c0_4, %c0_5] : memref<256x128xf32, #tpu.memory_space<vmem>>, vector<256x128xf32>
    tpu.vector_store %arg4[%c0_4, %c0_5], %4 {strides = array<i32>} : memref<256x128xf32, #tpu.memory_space<vmem>>, vector<256x128xf32>,
    return
  }
  func.func @transform_0(%arg0: i32, %arg1: i32) -> (i32, i32) {
    %c0_i32 = arith.constant 0 : i32
    %c0_i32_0 = arith.constant 0 : i32
    return %arg0, %c0_i32 : i32, i32
  }
  func.func @transform_1(%arg0: i32, %arg1: i32) -> (i32, i32) {
    %c0_i32 = arith.constant 0 : i32
    %c0_i32_0 = arith.constant 0 : i32
    return %c0_i32, %arg1 : i32, i32
  }
  func.func @transform_2(%arg0: i32, %arg1: i32) -> (i32, i32) {
    %c0_i32 = arith.constant 0 : i32
    return %arg0, %arg1 : i32, i32
  }
}

</mosaic_0001>

<llo_original>
// kernel: tpu_custom_call.1
$region0: #{tpu_custom_call.1}
  #allocation0 [shape = 'u32[]', space=smem, size = 0x4, offset = 0x4, fixed_abs, tag = 'smem constant byte address 0x4 - core index']
  #allocation1 [shape = 'u32[144,128]{1,0:T(1,128)}', space=vmem, size = 0x12000, scoped, tag = 'internal scratch']
  %s0 = inlined_call_operand.vmem [shape: bf16[2048,27], index: 0, kind: input, shape index: {}]
  %s1 = inlined_call_operand.vmem [shape: bf16[27,128], index: 1, kind: input, shape index: {}]
  %s2 = inlined_call_operand.hbm [shape: f32[2048,128], index: 2, kind: output, shape index: {}]
  %s3 = sld [smem:[#allocation0]]
  $region41: #{tpu_custom_call.1} parent=0
    _
  %s5 = ssub.s32 1, %s3
  %s6 = scalar_select 0, %s5, %s3
  $region1: #{tpu_custom_call.1} parent=0
    #allocation2 [shape = 'u8[262144]{0}', space=vmem, size = 0x40000, scoped, tag = 'output window, operand 0']
    #allocation3 [shape = 's32[2]{0}', space=sflag, size = 0x8, scoped, tag = 'scoped memory for tpu_custom_call.1']
    %7 = vsyncpa [#allocation3], 0
    %s8 = scalar_lea.sflag [#allocation3], 1
    %9 = vsyncpa %s8, 0
    loop: start=0, step=1, limit=10
    $region2: #{tpu_custom_call.1} parent=1 // loop_pre_header
      _
    $region3: #{tpu_custom_call.1} parent=1 // loop_header
      %s11 = sphi 0, %s15
      %p12 = scmp.ge.s32.totalorder %s11, 10
      %s18 = sphi 0, %s30
      %s19 = sphi 0, %s26
      %s20 = sphi 0, %s18
      %s21 = sphi 0, %s19
      %s22 = sphi 0, %s20
      %s23 = sphi 0, %s21
      %s33 = sphi 0, %s35
      %s36 = sphi 0, %s33
      %s37 = sphi 0, %s36
      %s53 = sphi 0, %s37
      %s59 = sphi 0, %s61
      %s62 = sphi 0, %s59
      %s63 = sphi 0, %s62
      %s79 = sphi 0, %s63
      %s87 = sphi 0, %s89
      %s90 = sphi 0, %s87
      %s91 = sphi 0, %s90
      %s107 = sphi 0, %s91
    $region4: #{tpu_custom_call.1} parent=1 // loop_header_branch
      %14 = sbr.rel (%p12) target = $region8
    $region5: #{tpu_custom_call.1} parent=1 // loop_body
      %s16 = ssub.s32 %s11, 1
      %s17 = ssub.s32 %s11, 2
      %s24 = sadd.s32 1, %s19
      %p25 = scmp.ge.s32.totalorder %s24, 1
      %s26 = scalar_select %p25, 0, %s24
      %s27 = sadd.s32 1, %s18
      %s28 = scalar_select %p25, %s27, %s18
      %p29 = scmp.ge.s32.totalorder %s28, 8
      %s30 = scalar_select %p29, 0, %s28
      %s31 = ssub.s32 %s18, %s30
      %p32 = scmp.eq.s32.totalorder %s31, 0
      %s34 = sadd.s32 %s33, 1
      %s35 = scalar_select %p32, %s33, %s34
      %p38 = pneg %p32
      %p39 = scmp.eq.s32.totalorder %s11, 7
      %p40 = por %p38, %p39
      %p41 = scmp.ne.s32.totalorder %s33, %s36
      %p42 = scmp.eq.s32.totalorder %s11, 0
      %p43 = por %p41, %p42
      %p44 = scmp.ne.s32.totalorder %s33, %s36
      %p45 = scmp.eq.s32.totalorder %s16, 7
      %p46 = por %p44, %p45
      %p47 = scmp.ne.s32.totalorder %s36, %s37
      %p48 = scmp.eq.s32.totalorder %s16, 0
      %p49 = por %p47, %p48
      %p50 = scmp.ne.s32.totalorder %s36, %s37
      %p51 = scmp.eq.s32.totalorder %s17, 7
      %p52 = por %p50, %p51
      %p54 = scmp.ne.s32.totalorder %s37, %s53
      %p55 = scmp.eq.s32.totalorder %s17, 0
      %p56 = por %p54, %p55
      %s57 = ssub.s32 %s19, %s26
      %p58 = scmp.eq.s32.totalorder %s57, 0
      %s60 = sadd.s32 %s59, 1
      %s61 = scalar_select %p58, %s59, %s60
      %p64 = pneg %p58
      %p65 = scmp.eq.s32.totalorder %s11, 7
      %p66 = por %p64, %p65
      %p67 = scmp.ne.s32.totalorder %s59, %s62
      %p68 = scmp.eq.s32.totalorder %s11, 0
      %p69 = por %p67, %p68
      %p70 = scmp.ne.s32.totalorder %s59, %s62
      %p71 = scmp.eq.s32.totalorder %s16, 7
      %p72 = por %p70, %p71
      %p73 = scmp.ne.s32.totalorder %s62, %s63
      %p74 = scmp.eq.s32.totalorder %s16, 0
      %p75 = por %p73, %p74
      %p76 = scmp.ne.s32.totalorder %s62, %s63
      %p77 = scmp.eq.s32.totalorder %s17, 7
      %p78 = por %p76, %p77
      %p80 = scmp.ne.s32.totalorder %s63, %s79
      %p81 = scmp.eq.s32.totalorder %s17, 0
      %p82 = por %p80, %p81
      %s83 = ssub.s32 %s18, %s30
      %s84 = ssub.s32 %s19, %s26
      %s85 = sor.u32 %s83, %s84
      %p86 = scmp.eq.s32.totalorder %s85, 0
      %s88 = sadd.s32 %s87, 1
      %s89 = scalar_select %p86, %s87, %s88
      %p92 = pneg %p86
      %p93 = scmp.eq.s32.totalorder %s11, 7
      %p94 = por %p92, %p93
      %p95 = scmp.ne.s32.totalorder %s87, %s90
      %p96 = scmp.eq.s32.totalorder %s11, 0
      %p97 = por %p95, %p96
      %p98 = scmp.ne.s32.totalorder %s87, %s90
      %p99 = scmp.eq.s32.totalorder %s16, 7
      %p100 = por %p98, %p99
      %p101 = scmp.ne.s32.totalorder %s90, %s91
      %p102 = scmp.eq.s32.totalorder %s16, 0
      %p103 = por %p101, %p102
      %p104 = scmp.ne.s32.totalorder %s90, %s91
      %p105 = scmp.eq.s32.totalorder %s17, 7
      %p106 = por %p104, %p105
      %p108 = scmp.ne.s32.totalorder %s91, %s107
      %p109 = scmp.eq.s32.totalorder %s17, 0
      %p110 = por %p108, %p109
      %p111 = scmp.le.s32.totalorder 1, %s11
      %p112 = scmp.lt.s32.totalorder %s11, 9
      %p113 = pnand %p111, %p112
      %p114 = pneg %p113
      // Predicated region
      $region9: #{tpu_custom_call.1} parent=5 // pred_check
        _
      $region10: #{tpu_custom_call.1} parent=5 // pred_check_branch
        %116 = sbr.rel (%p113) target = $region12
      $region11: #{tpu_custom_call.1} parent=5 // pred_region
        %s117 = ssub.s32 %s11, 1
        // Predicated region
        $region13: #{tpu_custom_call.1} parent=11 // pred_check
          %p118 = pneg %p75
        $region14: #{tpu_custom_call.1} parent=11 // pred_check_branch
          %120 = sbr.rel (%p118) target = $region16
        $region15: #{tpu_custom_call.1} parent=11 // pred_region
          %p121 = scmp.lt.s32.totalorder %s21, 0
          %s122 = scalar_select %p121, %s21, 0
          %s123 = smul.addr %s122, 4
          %s124 = scalar_lea.vmem %s1, %s123
        $region16: #{tpu_custom_call.1} parent=11 // pred_fallthru
          _
      $region12: #{tpu_custom_call.1} parent=5 // pred_fallthru
        _
      %p125 = scmp.lt.s32.totalorder %s11, 8
      // Predicated region
      $region17: #{tpu_custom_call.1} parent=5 // pred_check
        %p126 = pneg %p125
      $region18: #{tpu_custom_call.1} parent=5 // pred_check_branch
        %128 = sbr.rel (%p126) target = $region20
      $region19: #{tpu_custom_call.1} parent=5 // pred_region
        // Predicated region
        $region21: #{tpu_custom_call.1} parent=19 // pred_check
          %p129 = pneg %p43
        $region22: #{tpu_custom_call.1} parent=19 // pred_check_branch
          %131 = sbr.rel (%p129) target = $region24
        $region23: #{tpu_custom_call.1} parent=19 // pred_region
          %s132 = smul.u32 32, %s18
          %p133 = scmp.lt.s32.totalorder %s132, 255
          %s134 = scalar_select %p133, %s132, 255
          %s135 = smul.addr %s134, 4
          %s136 = scalar_lea.vmem %s0, %s135
          %s137 = smul.u32 32, %s18
        $region24: #{tpu_custom_call.1} parent=19 // pred_fallthru
          _
      $region20: #{tpu_custom_call.1} parent=5 // pred_fallthru
        _
      %p138 = scmp.le.s32.totalorder 1, %s11
      %p139 = scmp.lt.s32.totalorder %s11, 9
      %p140 = pnand %p138, %p139
      %p141 = pneg %p140
      // Predicated region
      $region25: #{tpu_custom_call.1} parent=5 // pred_check
        _
      $region26: #{tpu_custom_call.1} parent=5 // pred_check_branch
        %143 = sbr.rel (%p140) target = $region28
      $region27: #{tpu_custom_call.1} parent=5 // pred_region
        %s144 = ssub.s32 %s11, 1
        %s145 = smul.u32 32, %s20
        %p146 = scmp.lt.s32.totalorder %s145, 255
        %s147 = scalar_select %p146, %s145, 255
        %s148 = smul.addr %s147, 4
        %s149 = scalar_lea.vmem %s0, %s148
        %p150 = pneg %p49
        %p151 = pneg %p46
        %p152 = scmp.lt.s32.totalorder %s21, 0
        %s153 = scalar_select %p152, %s21, 0
        %s154 = smul.addr %s153, 4
        %s155 = scalar_lea.vmem %s1, %s154
        %p156 = pneg %p75
        %p157 = pneg %p72
        %p158 = pneg %p103
        %p159 = pneg %p100
        %s160 = sand.u32 %s90, 1
        %s161 = scalar_lea.sflag [#allocation3], %s160
        %s162 = sand.u32 %s90, 1
        %s163 = smul.addr %s162, 256
        %s164 = scalar_lea.vmem [#allocation2], %s163
        %s165 = smul.u32 32, %s20
        %p166 = scmp.lt.s32.totalorder %s165, 255
        %s167 = scalar_select %p166, %s165, 255
        %s168 = smul.addr %s167, 4
        %s169 = scalar_lea.vmem %s0, %s168
        %s170 = smul.u32 32, %s20
        %p171 = scmp.lt.s32.totalorder %s21, 0
        %s172 = scalar_select %p171, %s21, 0
        %s173 = smul.addr %s172, 4
        %s174 = scalar_lea.vmem %s1, %s173
        %s175 = smul.u32 32, %s20
        %v177 = vld [vmem:[%s169] sm:$0xf]
        %v178 = vld [vmem:[%s169 + $0x4] sm:$0xf]
        %v179 = vld [vmem:[%s169 + $0x8] sm:$0xf]
        %v180 = vld [vmem:[%s169 + $0xc] sm:$0xf]
        %v181 = vld [vmem:[%s169 + $0x10] sm:$0xf]
        %v182 = vld [vmem:[%s169 + $0x14] sm:$0xf]
        %v183 = vld [vmem:[%s169 + $0x18] sm:$0xf]
        %v184 = vld [vmem:[%s169 + $0x1c] sm:$0xf]
        %v185 = vld [vmem:[%s169 + $0x20] sm:$0xf]
        %v186 = vld [vmem:[%s169 + $0x24] sm:$0xf]
        %v187 = vld [vmem:[%s169 + $0x28] sm:$0xf]
        %v188 = vld [vmem:[%s169 + $0x2c] sm:$0xf]
        %v189 = vld [vmem:[%s169 + $0x30] sm:$0xf]
        %v190 = vld [vmem:[%s169 + $0x34] sm:$0xf]
        %v191 = vld [vmem:[%s169 + $0x38] sm:$0xf]
        %v192 = vld [vmem:[%s169 + $0x3c] sm:$0xf]
        %v193 = vld [vmem:[%s169 + $0x40] sm:$0xf]
        %v194 = vld [vmem:[%s169 + $0x44] sm:$0xf]
        %v195 = vld [vmem:[%s169 + $0x48] sm:$0xf]
        %v196 = vld [vmem:[%s169 + $0x4c] sm:$0xf]
        %v197 = vld [vmem:[%s169 + $0x50] sm:$0xf]
        %v198 = vld [vmem:[%s169 + $0x54] sm:$0xf]
        %v199 = vld [vmem:[%s169 + $0x58] sm:$0xf]
        %v200 = vld [vmem:[%s169 + $0x5c] sm:$0xf]
        %v201 = vld [vmem:[%s169 + $0x60] sm:$0xf]
        %v202 = vld [vmem:[%s169 + $0x64] sm:$0xf]
        %v203 = vld [vmem:[%s169 + $0x68] sm:$0xf]
        %v204 = vld [vmem:[%s169 + $0x6c] sm:$0xf]
        %v205 = vld [vmem:[%s169 + $0x70] sm:$0xf]
        %v206 = vld [vmem:[%s169 + $0x74] sm:$0xf]
        %v207 = vld [vmem:[%s169 + $0x78] sm:$0xf]
        %v208 = vld [vmem:[%s169 + $0x7c] sm:$0xf]
        %v209 = vld [vmem:[%s174] sm:$0xf]
        %v210 = vld [vmem:[%s174 + $0x4] sm:$0xf]
        %v211 = vld [vmem:[%s174 + $0x8] sm:$0xf]
        %v212 = vld [vmem:[%s174 + $0xc] sm:$0x3]
        %v245 = vunpack.c.l.b16 %v177
        %v246 = vunpack.c.l.b16 %v178
        %v247 = vunpack.c.l.b16 %v179
        %v248 = vunpack.c.l.b16 %v180
        %v249 = vunpack.c.l.b16 %v181
        %v250 = vunpack.c.l.b16 %v182
        %v251 = vunpack.c.l.b16 %v183
        %v252 = vunpack.c.l.b16 %v184
        %v253 = vunpack.c.l.b16 %v185
        %v254 = vunpack.c.l.b16 %v186
        %v255 = vunpack.c.l.b16 %v187
        %v256 = vunpack.c.l.b16 %v188
        %v257 = vunpack.c.l.b16 %v189
        %v258 = vunpack.c.l.b16 %v190
        %v259 = vunpack.c.l.b16 %v191
        %v260 = vunpack.c.l.b16 %v192
        %v261 = vunpack.c.l.b16 %v193
        %v262 = vunpack.c.l.b16 %v194
        %v263 = vunpack.c.l.b16 %v195
        %v264 = vunpack.c.l.b16 %v196
        %v265 = vunpack.c.l.b16 %v197
        %v266 = vunpack.c.l.b16 %v198
        %v267 = vunpack.c.l.b16 %v199
        %v268 = vunpack.c.l.b16 %v200
        %v269 = vunpack.c.l.b16 %v201
        %v270 = vunpack.c.l.b16 %v202
        %v271 = vunpack.c.l.b16 %v203
        %v272 = vunpack.c.l.b16 %v204
        %v273 = vunpack.c.l.b16 %v205
        %v274 = vunpack.c.l.b16 %v206
        %v275 = vunpack.c.l.b16 %v207
        %v276 = vunpack.c.l.b16 %v208
        %v277 = vpack.c.b16 %v246, %v245
        %v278 = vpack.c.b16 %v248, %v247
        %v279 = vpack.c.b16 %v250, %v249
        %v280 = vpack.c.b16 %v252, %v251
        %v281 = vpack.c.b16 %v254, %v253
        %v282 = vpack.c.b16 %v256, %v255
        %v283 = vpack.c.b16 %v258, %v257
        %v284 = vpack.c.b16 %v260, %v259
        %v285 = vpack.c.b16 %v262, %v261
        %v286 = vpack.c.b16 %v264, %v263
        %v287 = vpack.c.b16 %v266, %v265
        %v288 = vpack.c.b16 %v268, %v267
        %v289 = vpack.c.b16 %v270, %v269
        %v290 = vpack.c.b16 %v272, %v271
        %v291 = vpack.c.b16 %v274, %v273
        %v292 = vpack.c.b16 %v276, %v275
        %v297 = vunpack.c.l.b16 %v209
        %v298 = vunpack.c.l.b16 %v210
        %v299 = vunpack.c.l.b16 %v211
        %v300 = vunpack.c.l.b16 %v212
        %v301 = vpack.c.b16 %v298, %v297
        %v302 = vpack.c.b16 %v300, %v299
        %vm304 = vcmask 220160
        %v306 = vsel %vm304, %v277, 0
        %v309 = vsel %vm304, %v278, 0
        %v312 = vsel %vm304, %v279, 0
        %v315 = vsel %vm304, %v280, 0
        %v318 = vsel %vm304, %v281, 0
        %v321 = vsel %vm304, %v282, 0
        %v324 = vsel %vm304, %v283, 0
        %v327 = vsel %vm304, %v284, 0
        %v330 = vsel %vm304, %v285, 0
        %v333 = vsel %vm304, %v286, 0
        %v336 = vsel %vm304, %v287, 0
        %v339 = vsel %vm304, %v288, 0
        %v342 = vsel %vm304, %v289, 0
        %v345 = vsel %vm304, %v290, 0
        %v348 = vsel %vm304, %v291, 0
        %v351 = vsel %vm304, %v292, 0
        %vm353 = vcmask 1044480
        %vm354 = vcmask 1045504
        %v355 = vsel %vm353, 4294967295, 65535
        %v356 = vsel %vm354, %v355, 0
        %v358 = vand.u32 %v302, %v356
        %360 = vmatprep.subr.bf16.mxu0 0
        %361 = vmatpush1.bf16.msra.mxu0 %v301
        %362 = vmatprep.subr.bf16.mxu0 0
        %363 = vmatpush1.bf16.msra.mxu0 %v358
        %364 = vmatprep.subr.bf16.mxu0 0
        %365 = vmatpush1.bf16.msra.mxu0 0
        %366 = vmatprep.subr.bf16.mxu0 0
        %367 = vmatpush1.bf16.msra.mxu0 0
        %368 = vmatprep.subr.bf16.mxu0 0
        %369 = vmatpush1.bf16.msra.mxu0 0
        %370 = vmatprep.subr.bf16.mxu0 0
        %371 = vmatpush1.bf16.msra.mxu0 0
        %372 = vmatprep.subr.bf16.mxu0 0
        %373 = vmatpush1.bf16.msra.mxu0 0
        %374 = vmatprep.subr.bf16.mxu0 0
        %375 = vmatpush1.bf16.msra.mxu0 0
        %376 = vmatprep.subr.bf16.mxu0 0
        %377 = vmatpush1.bf16.msra.mxu0 0
        %378 = vmatprep.subr.bf16.mxu0 0
        %379 = vmatpush1.bf16.msra.mxu0 0
        %380 = vmatprep.subr.bf16.mxu0 0
        %381 = vmatpush1.bf16.msra.mxu0 0
        %382 = vmatprep.subr.bf16.mxu0 0
        %383 = vmatpush1.bf16.msra.mxu0 0
        %384 = vmatprep.subr.bf16.mxu0 0
        %385 = vmatpush1.bf16.msra.mxu0 0
        %386 = vmatprep.subr.bf16.mxu0 0
        %387 = vmatpush1.bf16.msra.mxu0 0
        %388 = vmatprep.subr.bf16.mxu0 0
        %389 = vmatpush1.bf16.msra.mxu0 0
        %390 = vmatprep.subr.bf16.mxu0 0
        %391 = vmatpush1.bf16.msra.mxu0 0
        %392 = vmatprep.mubr.bf16.mxu0 0
        %393 = vmatmul.mubr.bf16.gmra.mrb[0].mxu0 %v306
        %v394 = vpop.f32.mrb[0].mxu0
        %v395 = vadd.f32 0.0, %v394
        %v396 = vpop.f32.mrb[0].mxu0
        %v397 = vpop.f32.mrb[0].mxu0
        %v398 = vadd.f32 0.0, %v397
        %v399 = vpop.f32.mrb[0].mxu0
        %400 = vmatprep.mubr.bf16.mxu0 0
        %401 = vmatmul.mubr.bf16.gmra.mrb[0].mxu0 %v309
        %v402 = vpop.f32.mrb[0].mxu0
        %v403 = vadd.f32 0.0, %v402
        %v404 = vpop.f32.mrb[0].mxu0
        %v405 = vpop.f32.mrb[0].mxu0
        %v406 = vadd.f32 0.0, %v405
        %v407 = vpop.f32.mrb[0].mxu0
        %408 = vmatprep.mubr.bf16.mxu0 0
        %409 = vmatmul.mubr.bf16.gmra.mrb[0].mxu0 %v312
        %v410 = vpop.f32.mrb[0].mxu0
        %v411 = vadd.f32 0.0, %v410
        %v412 = vpop.f32.mrb[0].mxu0
        %v413 = vpop.f32.mrb[0].mxu0
        %v414 = vadd.f32 0.0, %v413
        %v415 = vpop.f32.mrb[0].mxu0
        %416 = vmatprep.mubr.bf16.mxu0 0
        %417 = vmatmul.mubr.bf16.gmra.mrb[0].mxu0 %v315
        %v418 = vpop.f32.mrb[0].mxu0
        %v419 = vadd.f32 0.0, %v418
        %v420 = vpop.f32.mrb[0].mxu0
        %v421 = vpop.f32.mrb[0].mxu0
        %v422 = vadd.f32 0.0, %v421
        %v423 = vpop.f32.mrb[0].mxu0
        %424 = vmatprep.mubr.bf16.mxu0 0
        %425 = vmatmul.mubr.bf16.gmra.mrb[0].mxu0 %v318
        %v426 = vpop.f32.mrb[0].mxu0
        %v427 = vadd.f32 0.0, %v426
        %v428 = vpop.f32.mrb[0].mxu0
        %v429 = vpop.f32.mrb[0].mxu0
        %v430 = vadd.f32 0.0, %v429
        %v431 = vpop.f32.mrb[0].mxu0
        %432 = vmatprep.mubr.bf16.mxu0 0
        %433 = vmatmul.mubr.bf16.gmra.mrb[0].mxu0 %v321
        %v434 = vpop.f32.mrb[0].mxu0
        %v435 = vadd.f32 0.0, %v434
        %v436 = vpop.f32.mrb[0].mxu0
        %v437 = vpop.f32.mrb[0].mxu0
        %v438 = vadd.f32 0.0, %v437
        %v439 = vpop.f32.mrb[0].mxu0
        %440 = vmatprep.mubr.bf16.mxu0 0
        %441 = vmatmul.mubr.bf16.gmra.mrb[0].mxu0 %v324
        %v442 = vpop.f32.mrb[0].mxu0
        %v443 = vadd.f32 0.0, %v442
        %v444 = vpop.f32.mrb[0].mxu0
        %v445 = vpop.f32.mrb[0].mxu0
        %v446 = vadd.f32 0.0, %v445
        %v447 = vpop.f32.mrb[0].mxu0
        %448 = vmatprep.mubr.bf16.mxu0 0
        %449 = vmatmul.mubr.bf16.gmra.mrb[0].mxu0 %v327
        %v450 = vpop.f32.mrb[0].mxu0
        %v451 = vadd.f32 0.0, %v450
        %v452 = vpop.f32.mrb[0].mxu0
        %v453 = vpop.f32.mrb[0].mxu0
        %v454 = vadd.f32 0.0, %v453
        %v455 = vpop.f32.mrb[0].mxu0
        %456 = vmatprep.mubr.bf16.mxu0 0
        %457 = vmatmul.mubr.bf16.gmra.mrb[0].mxu0 %v330
        %v458 = vpop.f32.mrb[0].mxu0
        %v459 = vadd.f32 0.0, %v458
        %v460 = vpop.f32.mrb[0].mxu0
        %v461 = vpop.f32.mrb[0].mxu0
        %v462 = vadd.f32 0.0, %v461
        %v463 = vpop.f32.mrb[0].mxu0
        %464 = vmatprep.mubr.bf16.mxu0 0
        %465 = vmatmul.mubr.bf16.gmra.mrb[0].mxu0 %v333
        %v466 = vpop.f32.mrb[0].mxu0
        %v467 = vadd.f32 0.0, %v466
        %v468 = vpop.f32.mrb[0].mxu0
        %v469 = vpop.f32.mrb[0].mxu0
        %v470 = vadd.f32 0.0, %v469
        %v471 = vpop.f32.mrb[0].mxu0
        %472 = vmatprep.mubr.bf16.mxu0 0
        %473 = vmatmul.mubr.bf16.gmra.mrb[0].mxu0 %v336
        %v474 = vpop.f32.mrb[0].mxu0
        %v475 = vadd.f32 0.0, %v474
        %v476 = vpop.f32.mrb[0].mxu0
        %v477 = vpop.f32.mrb[0].mxu0
        %v478 = vadd.f32 0.0, %v477
        %v479 = vpop.f32.mrb[0].mxu0
        %480 = vmatprep.mubr.bf16.mxu0 0
        %481 = vmatmul.mubr.bf16.gmra.mrb[0].mxu0 %v339
        %v482 = vpop.f32.mrb[0].mxu0
        %v483 = vadd.f32 0.0, %v482
        %v484 = vpop.f32.mrb[0].mxu0
        %v485 = vpop.f32.mrb[0].mxu0
        %v486 = vadd.f32 0.0, %v485
        %v487 = vpop.f32.mrb[0].mxu0
        %488 = vmatprep.mubr.bf16.mxu0 0
        %489 = vmatmul.mubr.bf16.gmra.mrb[0].mxu0 %v342
        %v490 = vpop.f32.mrb[0].mxu0
        %v491 = vadd.f32 0.0, %v490
        %v492 = vpop.f32.mrb[0].mxu0
        %v493 = vpop.f32.mrb[0].mxu0
        %v494 = vadd.f32 0.0, %v493
        %v495 = vpop.f32.mrb[0].mxu0
        %496 = vmatprep.mubr.bf16.mxu0 0
        %497 = vmatmul.mubr.bf16.gmra.mrb[0].mxu0 %v345
        %v498 = vpop.f32.mrb[0].mxu0
        %v499 = vadd.f32 0.0, %v498
        %v500 = vpop.f32.mrb[0].mxu0
        %v501 = vpop.f32.mrb[0].mxu0
        %v502 = vadd.f32 0.0, %v501
        %v503 = vpop.f32.mrb[0].mxu0
        %504 = vmatprep.mubr.bf16.mxu0 0
        %505 = vmatmul.mubr.bf16.gmra.mrb[0].mxu0 %v348
        %v506 = vpop.f32.mrb[0].mxu0
        %v507 = vadd.f32 0.0, %v506
        %v508 = vpop.f32.mrb[0].mxu0
        %v509 = vpop.f32.mrb[0].mxu0
        %v510 = vadd.f32 0.0, %v509
        %v511 = vpop.f32.mrb[0].mxu0
        %512 = vmatprep.mubr.bf16.mxu0 0
        %513 = vmatmul.mubr.bf16.gmra.mrb[0].mxu0 %v351
        %v514 = vpop.f32.mrb[0].mxu0
        %v515 = vadd.f32 0.0, %v514
        %v516 = vpop.f32.mrb[0].mxu0
        %v517 = vpop.f32.mrb[0].mxu0
        %v518 = vadd.f32 0.0, %v517
        %v519 = vpop.f32.mrb[0].mxu0
        %520 = vdwg.mxu0
        %v521 = vmax.f32 %v395, 0.0
        %v522 = vmax.f32 %v398, 0.0
        %v523 = vmax.f32 %v403, 0.0
        %v524 = vmax.f32 %v406, 0.0
        %v525 = vmax.f32 %v411, 0.0
        %v526 = vmax.f32 %v414, 0.0
        %v527 = vmax.f32 %v419, 0.0
        %v528 = vmax.f32 %v422, 0.0
        %v529 = vmax.f32 %v427, 0.0
        %v530 = vmax.f32 %v430, 0.0
        %v531 = vmax.f32 %v435, 0.0
        %v532 = vmax.f32 %v438, 0.0
        %v533 = vmax.f32 %v443, 0.0
        %v534 = vmax.f32 %v446, 0.0
        %v535 = vmax.f32 %v451, 0.0
        %v536 = vmax.f32 %v454, 0.0
        %v537 = vmax.f32 %v459, 0.0
        %v538 = vmax.f32 %v462, 0.0
        %v539 = vmax.f32 %v467, 0.0
        %v540 = vmax.f32 %v470, 0.0
        %v541 = vmax.f32 %v475, 0.0
        %v542 = vmax.f32 %v478, 0.0
        %v543 = vmax.f32 %v483, 0.0
        %v544 = vmax.f32 %v486, 0.0
        %v545 = vmax.f32 %v491, 0.0
        %v546 = vmax.f32 %v494, 0.0
        %v547 = vmax.f32 %v499, 0.0
        %v548 = vmax.f32 %v502, 0.0
        %v549 = vmax.f32 %v507, 0.0
        %v550 = vmax.f32 %v510, 0.0
        %v551 = vmax.f32 %v515, 0.0
        %v552 = vmax.f32 %v518, 0.0
        %553 = vst [vmem:[%s164] sm:$0xff] %v521
        %554 = vst [vmem:[%s164 + $0x8] sm:$0xff] %v522
        %555 = vst [vmem:[%s164 + $0x10] sm:$0xff] %v523
        %556 = vst [vmem:[%s164 + $0x18] sm:$0xff] %v524
        %557 = vst [vmem:[%s164 + $0x20] sm:$0xff] %v525
        %558 = vst [vmem:[%s164 + $0x28] sm:$0xff] %v526
        %559 = vst [vmem:[%s164 + $0x30] sm:$0xff] %v527
        %560 = vst [vmem:[%s164 + $0x38] sm:$0xff] %v528
        %561 = vst [vmem:[%s164 + $0x40] sm:$0xff] %v529
        %562 = vst [vmem:[%s164 + $0x48] sm:$0xff] %v530
        %563 = vst [vmem:[%s164 + $0x50] sm:$0xff] %v531
        %564 = vst [vmem:[%s164 + $0x58] sm:$0xff] %v532
        %565 = vst [vmem:[%s164 + $0x60] sm:$0xff] %v533
        %566 = vst [vmem:[%s164 + $0x68] sm:$0xff] %v534
        %567 = vst [vmem:[%s164 + $0x70] sm:$0xff] %v535
        %568 = vst [vmem:[%s164 + $0x78] sm:$0xff] %v536
        %569 = vst [vmem:[%s164 + $0x80] sm:$0xff] %v537
        %570 = vst [vmem:[%s164 + $0x88] sm:$0xff] %v538
        %571 = vst [vmem:[%s164 + $0x90] sm:$0xff] %v539
        %572 = vst [vmem:[%s164 + $0x98] sm:$0xff] %v540
        %573 = vst [vmem:[%s164 + $0xa0] sm:$0xff] %v541
        %574 = vst [vmem:[%s164 + $0xa8] sm:$0xff] %v542
        %575 = vst [vmem:[%s164 + $0xb0] sm:$0xff] %v543
        %576 = vst [vmem:[%s164 + $0xb8] sm:$0xff] %v544
        %577 = vst [vmem:[%s164 + $0xc0] sm:$0xff] %v545
        %578 = vst [vmem:[%s164 + $0xc8] sm:$0xff] %v546
        %579 = vst [vmem:[%s164 + $0xd0] sm:$0xff] %v547
        %580 = vst [vmem:[%s164 + $0xd8] sm:$0xff] %v548
        %581 = vst [vmem:[%s164 + $0xe0] sm:$0xff] %v549
        %582 = vst [vmem:[%s164 + $0xe8] sm:$0xff] %v550
        %583 = vst [vmem:[%s164 + $0xf0] sm:$0xff] %v551
        %584 = vst [vmem:[%s164 + $0xf8] sm:$0xff] %v552
        %s585 = sand.u32 %s90, 1
        %s586 = scalar_lea.sflag [#allocation3], %s585
        %s587 = sand.u32 %s90, 1
        %s588 = smul.addr %s587, 256
        %s589 = scalar_lea.vmem [#allocation2], %s588
        // Predicated region
        $region29: #{tpu_custom_call.1} parent=27 // pred_check
          %p590 = pneg %p100
        $region30: #{tpu_custom_call.1} parent=27 // pred_check_branch
          %592 = sbr.rel (%p590) target = $region32
        $region31: #{tpu_custom_call.1} parent=27 // pred_region
          %s593 = smul.u32 32, %s20
          %s595 = ssub.s32 4096, 4096
          %596 = vsyncadd %s586, %s595
          %s597 = sadd.s32 %s21, %s593
          %s598 = smul.addr %s597, 128
          %s599 = scalar_lea.hbm %s2, %s598
          %s600 = sshll.u32 %s589, 4
          %s601 = int_to_ptr.vmem [resolvable:$true] %s600
          %606 = dma.vmem_to_hbm [thread:$0]  %s601, 4096, %s599, %s586, 128, 128, 8
        $region32: #{tpu_custom_call.1} parent=27 // pred_fallthru
          _
      $region28: #{tpu_custom_call.1} parent=5 // pred_fallthru
        _
      %p607 = scmp.le.s32.totalorder 2, %s11
      // Predicated region
      $region33: #{tpu_custom_call.1} parent=5 // pred_check
        %p608 = pneg %p607
      $region34: #{tpu_custom_call.1} parent=5 // pred_check_branch
        %610 = sbr.rel (%p608) target = $region36
      $region35: #{tpu_custom_call.1} parent=5 // pred_region
        %s611 = ssub.s32 %s11, 2
        // Predicated region
        $region37: #{tpu_custom_call.1} parent=35 // pred_check
          %p612 = pneg %p106
        $region38: #{tpu_custom_call.1} parent=35 // pred_check_branch
          %614 = sbr.rel (%p612) target = $region40
        $region39: #{tpu_custom_call.1} parent=35 // pred_region
          %s615 = sand.u32 %s91, 1
          %s616 = scalar_lea.sflag [#allocation3], %s615
          %s617 = sand.u32 %s91, 1
          %s618 = smul.addr %s617, 256
          %s619 = scalar_lea.vmem [#allocation2], %s618
          %620 = dma.done %s616, 4096
        $region40: #{tpu_custom_call.1} parent=35 // pred_fallthru
          _
      $region36: #{tpu_custom_call.1} parent=5 // pred_fallthru
        _
    $region6: #{tpu_custom_call.1} parent=1 // loop_footer
      %s15 = sadd.s32 1, %s11
    $region7: #{tpu_custom_call.1} parent=1 // loop_footer_branch
      %10 = sbr.rel target = $region3
    $region8: #{tpu_custom_call.1} parent=1 // loop_exit
      _
    %621 = vsyncpa [#allocation3], 1
    %s622 = scalar_lea.sflag [#allocation3], 1
    %623 = vsyncpa %s622, 1

</llo_original>
